<compile_context>
chip_gen: v6e
topology: v6e:2x2x1
jax: 0.10.0
libtpu: 0.0.40
codegen_flags: <defaults>
</compile_context>

<pallas_src>
import jax
import jax.numpy as jnp
from jax.experimental import pallas as pl
from jax.experimental.pallas import tpu as pltpu


def _iob_mask_kernel(n_open_ref, x_ref, o_ref):
    """Multiplicative IOB mask on one (TB, TF) tile.

    n_open_ref : SMEM scalar-prefetch ref, shape (1,), int32
    x_ref, o_ref : VMEM tiles, (TB, TF)
    """
    n_open = n_open_ref[0]
    tb, tf = x_ref.shape
    # Global 0-based feature index of each lane in this tile.
    f_start = pl.program_id(1) * tf
    feat_idx = jax.lax.broadcasted_iota(jnp.int32, (tb, tf), dimension=1) + f_start
    # (iota < n_open) is equivalent to (arange(1, F+1) <= n_open).
    # Mask math is pure VPU work and rides for free under the HBM bottleneck.
    mask = (feat_idx < n_open).astype(x_ref.dtype)
    o_ref[...] = x_ref[...] * mask


def _choose_tiles(batch, num_features, itemsize):
    """Pick lane-dense tiles that maximize HBM-roofline fraction while keeping
    the double-buffered footprint (2 in + 2 out buffers) under ~16 MiB."""
    # Feature tile: keep lanes dense.  If F is a multiple of 128 cap at 1024
    # lanes; otherwise take the full extent (allowed by the BlockSpec rules).
    if num_features % 128 == 0:
        tf = min(num_features, 1024)
    else:
        tf = num_features
    # Sublane alignment depends on dtype packing (f32: 8, bf16: 16, int8: 32).
    sub = max(8, 32 // max(1, itemsize))
    # (2 input bufs + 2 output bufs) * tb * tf * itemsize <= ~16 MiB.
    budget = 16 * 1024 * 1024
    max_rows = max(sub, budget // (4 * tf * itemsize))
    tb = min(batch, 2048, max_rows)
    if tb < batch:
        tb = max(sub, (tb // sub) * sub)  # sublane-aligned when not full-extent
    return tb, tf


def stochastic_iob_forward(x, n_open):
    """out[b, f] = x[b, f] * (f < n_open)   for a (batch, num_features) input.

    NOTE: for tiny activations (a few KiB) letting XLA fuse
    `x * (arange < n_open)` into neighbouring ops is cheaper than a
    pallas_call; this kernel targets large activations.
    """
    batch, num_features = x.shape
    n_open_arr = jnp.asarray(n_open, dtype=jnp.int32).reshape((1,))

    tb, tf = _choose_tiles(batch, num_features, x.dtype.itemsize)
    grid = (pl.cdiv(batch, tb), pl.cdiv(num_features, tf))

    return pl.pallas_call(
        _iob_mask_kernel,
        out_shape=jax.ShapeDtypeStruct((batch, num_features), x.dtype),
        grid_spec=pltpu.PrefetchScalarGridSpec(
            num_scalar_prefetch=1,
            grid=grid,
            in_specs=[pl.BlockSpec((tb, tf), lambda i, j, n: (i, j))],
            out_specs=pl.BlockSpec((tb, tf), lambda i, j, n: (i, j)),
        ),
        compiler_params=pltpu.CompilerParams(
            # Every tile is independent: shard across v7x's 2 TensorCores.
            dimension_semantics=("parallel", "parallel"),
            vmem_limit_bytes=32 * 1024 * 1024,
        ),
    )(n_open_arr, x)


def sample_n_open(key, num_features, min_open=0):
    """Keyed equivalent of StochasticIOBLayer._sample_n_open for dist='uniform'."""
    # TODO(synk): 'geometric' / 'poisson' dists use host-side torch.distributions;
    # only the 'uniform' path is reproduced here (with jax.random).
    if min_open >= num_features:        # guard: randint upper bound would be 0
        return jnp.int32(num_features)
    sample = jax.random.randint(key, (), 0, num_features - min_open)
    return jnp.minimum(num_features, min_open + sample).astype(jnp.int32)


def _reference(x, n_open):
    num_features = x.shape[-1]
    feat_range = jnp.arange(1, num_features + 1)
    return x * (feat_range <= n_open).astype(x.dtype)


if __name__ == "__main__":
    key = jax.random.PRNGKey(0)
    k1x, k1n, k2x, k2n, k3x, k3n = jax.random.split(key, 6)

    # Case 1: small shape consistent with the module: (batch_size, num_features)
    x_small = jax.random.normal(k1x, (8, 32), dtype=jnp.float32)
    n_small = sample_n_open(k1n, 32, min_open=0)
    out_small = jax.block_until_ready(stochastic_iob_forward(x_small, n_small))
    assert out_small.shape == x_small.shape
    assert jnp.allclose(out_small, _reference(x_small, n_small)), "small-case mismatch"

    # Case 2: larger shape exercising batch tiling + lane-dense feature tiles
    x_big = jax.random.normal(k2x, (256, 1024), dtype=jnp.float32)
    n_big = sample_n_open(k2n, 1024, min_open=16)
    out_big = jax.block_until_ready(stochastic_iob_forward(x_big, n_big))
    assert out_big.shape == x_big.shape
    assert jnp.allclose(out_big, _reference(x_big, n_big)), "tiled-case mismatch"

    # Case 3: non-128-multiple feature dim + bf16 (full-extent feature block)
    x_odd = jax.random.normal(k3x, (48, 200), dtype=jnp.bfloat16)
    n_odd = sample_n_open(k3n, 200, min_open=4)
    out_odd = jax.block_until_ready(stochastic_iob_forward(x_odd, n_odd))
    assert out_odd.shape == x_odd.shape
    assert jnp.allclose(
        out_odd.astype(jnp.float32),
        _reference(x_odd, n_odd).astype(jnp.float32),
    ), "odd-shape mismatch"

    print("KERNEL_OK")
</pallas_src>

<mosaic_0001>
module attributes {stable_mosaic.version = 11 : i64} {
  func.func @_iob_mask_kernel(%arg0: i32, %arg1: i32, %arg2: memref<1xi32, #tpu.memory_space<smem>>, %arg3: memref<8x32xf32, #tpu.memory_space<vmem>>, %arg4: memref<8x32xf32, #tpu.memory_space<vmem>>) attributes {dimension_semantics = [#tpu.dimension_semantics<parallel>, #tpu.dimension_semantics<parallel>], iteration_bounds = array<i64: 1, 1>, scalar_prefetch = 1 : i64, scratch_operands = 0 : i64, tpu.core_type = #tpu.core_type<tc>, window_params = [{transform_indices = @transform_0, window_bounds = array<i64: 8, 32>}, {transform_indices = @transform_1, window_bounds = array<i64: 8, 32>}]} {
    %c0 = arith.constant 0 : index
    %0 = memref.load %arg2[%c0] : memref<1xi32, #tpu.memory_space<smem>>
    %c32_i32 = arith.constant 32 : i32
    %1 = arith.muli %arg1, %c32_i32 : i32
    %2 = tpu.iota {dimensions = array<i32: 1>} : vector<8x32xi32>
    %3 = vector.broadcast %1 : i32 to vector<8x32xi32>
    %4 = arith.addi %2, %3 : vector<8x32xi32>
    %5 = vector.broadcast %0 : i32 to vector<8x32xi32>
    %6 = arith.cmpi slt, %4, %5 : vector<8x32xi32>
    %7 = arith.extui %6 : vector<8x32xi1> to vector<8x32xi32>
    %8 = arith.sitofp %7 : vector<8x32xi32> to vector<8x32xf32>
    %c0_0 = arith.constant 0 : index
    %c0_1 = arith.constant 0 : index
    %9 = vector.load %arg3[%c0_0, %c0_1] : memref<8x32xf32, #tpu.memory_space<vmem>>, vector<8x32xf32>
    %10 = arith.mulf %9, %8 : vector<8x32xf32>
    %c0_2 = arith.constant 0 : index
    %c0_3 = arith.constant 0 : index
    %11 = vector.load %arg4[%c0_2, %c0_3] : memref<8x32xf32, #tpu.memory_space<vmem>>, vector<8x32xf32>
    tpu.vector_store %arg4[%c0_2, %c0_3], %10 {strides = array<i32>} : memref<8x32xf32, #tpu.memory_space<vmem>>, vector<8x32xf32>,
    return
  }
  func.func @transform_0(%arg0: i32, %arg1: i32, %arg2: memref<1xi32, #tpu.memory_space<smem>>) -> (i32, i32) {
    %c0_i32 = arith.constant 0 : i32
    return %arg0, %arg1 : i32, i32
  }
  func.func @transform_1(%arg0: i32, %arg1: i32, %arg2: memref<1xi32, #tpu.memory_space<smem>>) -> (i32, i32) {
    %c0_i32 = arith.constant 0 : i32
    return %arg0, %arg1 : i32, i32
  }
}

</mosaic_0001>

<llo_original>
// kernel: tpu_custom_call.1
$region0: #{tpu_custom_call.1}
  #allocation0 [shape = 'u32[]', space=smem, size = 0x4, offset = 0x4, fixed_abs, tag = 'smem constant byte address 0x4 - core index']
  #allocation1 [shape = 'u32[144,128]{1,0:T(1,128)}', space=vmem, size = 0x12000, scoped, tag = 'internal scratch']
  #allocation2 [shape = 's32[1]{0}', space=sflag, size = 0x4, scoped, tag = 'scoped memory for tpu_custom_call.1']
  #allocation3 [shape = 's32[1]{0:T(128)S(6)}', space=smem, size = 0x200, scoped, tag = 'prefetched SMEM operand 0']
  %s0 = inlined_call_operand.<no memory space> [shape: s32[1], index: 0, kind: input, shape index: {}]
  %s1 = inlined_call_operand.hbm [shape: f32[8,32], index: 1, kind: input, shape index: {}]
  %s2 = inlined_call_operand.hbm [shape: f32[8,32], index: 2, kind: output, shape index: {}]
  %s3 = sld [smem:[#allocation0]]
  $region18: #{tpu_custom_call.1} parent=0
    _
  %s5 = ssub.s32 1, %s3
  %s6 = scalar_select 0, %s5, %s3
  %7 = sst [smem:[#allocation3]] %s0
  $region1: #{tpu_custom_call.1} parent=0
    #allocation4 [shape = 'u8[4096]{0}', space=vmem, size = 0x1000, scoped, tag = 'input window, operand 1, single buffered']
    #allocation5 [shape = 's32[1]{0}', space=sflag, size = 0x4, scoped, tag = 'scoped memory for tpu_custom_call.1']
    #allocation6 [shape = 's32[1]{0}', space=sflag, size = 0x4, scoped, tag = 'scoped memory for tpu_custom_call.1']
    #allocation7 [shape = 'u8[4096]{0}', space=vmem, size = 0x1000, scoped, tag = 'output window, operand 0, single buffered']
    %8 = vsyncpa [#allocation5], 0
    %9 = vsyncpa [#allocation6], 0
    // Predicated region
    $region2: #{tpu_custom_call.1} parent=1 // pred_check
      _
    $region3: #{tpu_custom_call.1} parent=1 // pred_check_branch
      %11 = sbr.rel (0) target = $region5
    $region4: #{tpu_custom_call.1} parent=1 // pred_region
      %s13 = ssub.s32 128, 128
      %14 = vsyncadd [#allocation5], %s13
      %s16 = sshll.u32 [#allocation4], 4
      %s17 = int_to_ptr.vmem [resolvable:$true] %s16
      %19 = dma.hbm_to_vmem [thread:$0]  %s1, 128, %s17, [#allocation5]
    $region5: #{tpu_custom_call.1} parent=1 // pred_fallthru
      _
    // Predicated region
    $region6: #{tpu_custom_call.1} parent=1 // pred_check
      _
    $region7: #{tpu_custom_call.1} parent=1 // pred_check_branch
      %21 = sbr.rel (0) target = $region9
    $region8: #{tpu_custom_call.1} parent=1 // pred_region
      %22 = dma.done [#allocation5], 128
    $region9: #{tpu_custom_call.1} parent=1 // pred_fallthru
      _
    %s23 = sld [smem:[#allocation3]]
    %s24 = smul.u32 0, 32
    %v25 = vlaneseq
    %v26 = vand.u32 %v25, 127
    %v27 = vstv %s24
    %v28 = vadd.s32 %v26, %v27
    %v29 = vstv %s23
    %vm30 = vcmp.lt.s32.totalorder %v28, %v29
    %v31 = vsel %vm30, 1, 0
    %v32 = vcvt.s32.f32 %v31
    %v33 = vld [vmem:[#allocation4] sm:$0xff]
    %v34 = vmul.f32 %v33, %v32
    %vm35 = vcmask 261120
    %36 = vst.msk [vmem:[#allocation7] sm:$0xff] %vm35, %v34
    // Predicated region
    $region10: #{tpu_custom_call.1} parent=1 // pred_check
      _
    $region11: #{tpu_custom_call.1} parent=1 // pred_check_branch
      %38 = sbr.rel (0) target = $region13
    $region12: #{tpu_custom_call.1} parent=1 // pred_region
      %s40 = ssub.s32 128, 128
      %41 = vsyncadd [#allocation6], %s40
      %s43 = sshll.u32 [#allocation7], 4
      %s44 = int_to_ptr.vmem [resolvable:$true] %s43
      %46 = dma.vmem_to_hbm [thread:$0]  %s44, 128, %s2, [#allocation6]
    $region13: #{tpu_custom_call.1} parent=1 // pred_fallthru
      _
    // Predicated region
    $region14: #{tpu_custom_call.1} parent=1 // pred_check
      _
    $region15: #{tpu_custom_call.1} parent=1 // pred_check_branch
      %48 = sbr.rel (0) target = $region17
    $region16: #{tpu_custom_call.1} parent=1 // pred_region
      %49 = dma.done [#allocation6], 128
    $region17: #{tpu_custom_call.1} parent=1 // pred_fallthru
      _
    %50 = vsyncpa [#allocation5], 1
    %51 = vsyncpa [#allocation6], 1

</llo_original>
